<compile_context>
chip_gen: v6e
topology: v6e:2x2x1
jax: 0.10.0
libtpu: 0.0.40
codegen_flags: <defaults>
</compile_context>

<pallas_src>
import jax
import jax.numpy as jnp
from jax.experimental import pallas as pl
from jax.experimental.pallas import tpu as pltpu


def _attention_kernel(h_ref, m_ref, v_ref, reps_ref, attn_ref):
    # h_ref:    (TB, L, H)  hidden states, native dtype (f32/bf16)
    # m_ref:    (TB, L)     masks, any numeric dtype (nonzero == valid)
    # v_ref:    (1, H)      folded score vector v = W^T @ query (f32)
    # reps_ref: (TB, H)     pooled representations (hidden dtype)
    # attn_ref: (TB, L)     softmax attention weights (hidden dtype)
    h = h_ref[...].astype(jnp.float32)
    valid = m_ref[...] > 0
    v = v_ref[...].astype(jnp.float32)

    # scores[b, l] = h[b, l, :] . v   (VPU mul + XLU lane-reduce; no MXU)
    scores = jnp.sum(h * v[:, None, :], axis=-1)

    # masked_fill((1 - mask).bool(), -1e32) then softmax over doc_len, in f32.
    masked = jnp.where(valid, scores, jnp.float32(-1e32))
    mx = jnp.max(masked, axis=-1, keepdims=True)
    e = jnp.exp(masked - mx)
    denom = jnp.sum(e, axis=-1, keepdims=True)
    attn_w = e / denom  # exact divide; approx reciprocal would eat the 1e-5 tol

    # Re-mask only for the weighted sum (matches the module; fully-padded rows
    # still yield reps == 0 and uniform attention weights).
    masked_w = jnp.where(valid, attn_w, jnp.float32(0.0))
    reps = jnp.sum(h * masked_w[:, :, None], axis=1)   # (TB, H)

    reps_ref[...] = reps.astype(reps_ref.dtype)
    attn_ref[...] = attn_w.astype(attn_ref.dtype)


def _round_up(x, m):
    return -(-x // m) * m


def _vmem_capacity_bytes():
    try:
        cap = getattr(pltpu.get_tpu_info(), "vmem_capacity_bytes", None)
        if cap:
            return int(cap)
    except Exception:
        pass
    return 64 << 20  # conservative fallback: v7x per-TensorCore VMEM


def _choose_batch_tile(B, L, H, h_item, m_item, o_item, budget_bytes):
    """Largest batch tile whose (8,128)-padded VMEM footprint (double-buffered
    I/O tiles + f32 kernel intermediates) fits the budget."""
    sub_h = max(8, 32 // h_item)  # sublane tile rows for the hidden dtype
    h_slab = _round_up(L, sub_h) * _round_up(H, 128) * h_item   # per example
    m_row = _round_up(L, 128) * m_item
    attn_row = _round_up(L, 128) * o_item
    reps_row = _round_up(H, 128) * o_item
    io = 2 * (h_slab + m_row + attn_row + reps_row)             # double-buffered
    # f32 values materialized by the body: h cast, two broadcasted products,
    # ~8 (TB, L) row temporaries, f32 reps.
    work = (3 * _round_up(L, 8) * _round_up(H, 128) * 4
            + 8 * _round_up(L, 128) * 4
            + _round_up(H, 128) * 4)
    tb = budget_bytes // (io + work)
    tb = max(8, (tb // 8) * 8)
    # Beyond ~1K rows/step the ~0.35 us per-step overhead is already amortized.
    tb = min(tb, 1024)
    if B >= 16:
        # >= 2 grid steps so both v7x TensorCores get work on the parallel axis.
        tb = min(tb, max(8, ((B // 2) // 8) * 8))
    if B <= tb:
        tb = B  # single block; block dim == full array dim is always legal
    return tb


def attention_forward(batch_hidden, batch_masks, weight, bias, query):
    """batch_hidden: (B, L, H) in its native dtype (f32/bf16); batch_masks:
    (B, L) any numeric dtype (nonzero == valid); weight: (H, H) in PyTorch
    layout (key = x @ weight.T + bias); bias: (H,); query: (H,)."""
    B, L, H = batch_hidden.shape
    f32 = jnp.float32
    out_dtype = batch_hidden.dtype

    # Fold the linear layer: attn_value = h @ (W^T q) + (bias . q).  The bias
    # term is constant over doc_len and cancels in softmax, so only v is needed
    # and neither `key` nor the (H, H) weight ever enters the kernel.
    v = jnp.dot(jnp.asarray(weight, f32).T, jnp.asarray(query, f32)).reshape(1, H)

    h_item = jnp.dtype(batch_hidden.dtype).itemsize
    m_item = jnp.dtype(batch_masks.dtype).itemsize
    o_item = jnp.dtype(out_dtype).itemsize

    vmem_cap = _vmem_capacity_bytes()
    budget = min(int(vmem_cap * 0.35), 44 << 20)     # ~22 MiB v7x, ~44 MiB v5e/v6e
    vmem_limit = max(32 << 20, min(int(vmem_cap * 0.7), 90 << 20))

    TB = _choose_batch_tile(B, L, H, h_item, m_item, o_item, budget)
    grid = (pl.cdiv(B, TB),)  # ragged last block handled by Pallas (no jnp.pad)

    cost = pl.CostEstimate(
        flops=4 * B * L * H + 6 * B * L,
        transcendentals=B * L,
        bytes_accessed=(B * L * H * h_item + B * L * m_item
                        + B * (L + H) * o_item + H * 4),
    )

    reps, attn = pl.pallas_call(
        _attention_kernel,
        out_shape=(
            jax.ShapeDtypeStruct((B, H), out_dtype),
            jax.ShapeDtypeStruct((B, L), out_dtype),
        ),
        grid_spec=pltpu.PrefetchScalarGridSpec(
            num_scalar_prefetch=0,
            grid=grid,
            in_specs=[
                pl.BlockSpec((TB, L, H), lambda i: (i, 0, 0)),
                pl.BlockSpec((TB, L), lambda i: (i, 0)),
                # Constant index_map -> v is DMA'd once and stays VMEM-resident.
                pl.BlockSpec((1, H), lambda i: (0, 0)),
            ],
            out_specs=[
                pl.BlockSpec((TB, H), lambda i: (i, 0)),
                pl.BlockSpec((TB, L), lambda i: (i, 0)),
            ],
        ),
        compiler_params=pltpu.CompilerParams(
            dimension_semantics=("parallel",),
            vmem_limit_bytes=int(vmem_limit),
        ),
        cost_estimate=cost,
    )(batch_hidden, batch_masks, v)

    return reps, attn


def _reference(batch_hidden, batch_masks, weight, bias, query):
    key = jnp.einsum("blh,kh->blk", batch_hidden, weight) + bias
    attn_value = jnp.einsum("blk,k->bl", key, query)
    valid = batch_masks > 0.5
    masked_val = jnp.where(valid, attn_value, -1e32)
    attn_w = jax.nn.softmax(masked_val, axis=1)
    masked_w = jnp.where(valid, attn_w, 0.0)
    reps = jnp.einsum("bl,blh->bh", masked_w, batch_hidden)
    return reps, attn_w


if __name__ == "__main__":
    B, L, H = 2, 8, 32  # batch, doc_len, bihidden_size

    key0 = jax.random.PRNGKey(0)
    k_h, k_w, k_q = jax.random.split(key0, 3)

    batch_hidden = jax.random.normal(k_h, (B, L, H), dtype=jnp.float32)
    # example masks: first example full length, second has 3 padded positions
    batch_masks = jnp.array(
        [[1, 1, 1, 1, 1, 1, 1, 1],
         [1, 1, 1, 1, 1, 0, 0, 0]], dtype=jnp.float32)

    # deterministic parameter init matching the PyTorch module's __init__
    query = 0.05 * jax.random.normal(k_q, (H,), dtype=jnp.float32)     # N(0, 0.05)
    weight = 0.05 * jax.random.normal(k_w, (H, H), dtype=jnp.float32)  # N(0, 0.05)
    bias = jnp.zeros((H,), dtype=jnp.float32)                          # zeros

    reps, attn_weights = attention_forward(
        batch_hidden, batch_masks, weight, bias, query)
    jax.block_until_ready((reps, attn_weights))

    ref_reps, ref_attn = _reference(batch_hidden, batch_masks, weight, bias, query)
    assert jnp.allclose(reps, ref_reps, atol=1e-5, rtol=1e-5)
    assert jnp.allclose(attn_weights, ref_attn, atol=1e-5, rtol=1e-5)

    print("KERNEL_OK")
</pallas_src>

<mosaic_0001>
module attributes {stable_mosaic.version = 11 : i64} {
  func.func @_attention_kernel(%arg0: i32, %arg1: memref<2x8x32xf32, #tpu.memory_space<vmem>>, %arg2: memref<2x8xf32, #tpu.memory_space<vmem>>, %arg3: memref<1x32xf32, #tpu.memory_space<vmem>>, %arg4: memref<2x32xf32, #tpu.memory_space<vmem>>, %arg5: memref<2x8xf32, #tpu.memory_space<vmem>>) attributes {dimension_semantics = [#tpu.dimension_semantics<parallel>], iteration_bounds = array<i64: 1>, scalar_prefetch = 0 : i64, scratch_operands = 0 : i64, tpu.core_type = #tpu.core_type<tc>, window_params = [{transform_indices = @transform_0, window_bounds = array<i64: 2, 8, 32>}, {transform_indices = @transform_1, window_bounds = array<i64: 2, 8>}, {pipeline_mode = #tpu.pipeline_mode<synchronous>, transform_indices = @transform_2, window_bounds = array<i64: 1, 32>}, {transform_indices = @transform_3, window_bounds = array<i64: 2, 32>}, {transform_indices = @transform_4, window_bounds = array<i64: 2, 8>}]} {
    %c0 = arith.constant 0 : index
    %c0_0 = arith.constant 0 : index
    %c0_1 = arith.constant 0 : index
    %0 = vector.load %arg1[%c0, %c0_0, %c0_1] : memref<2x8x32xf32, #tpu.memory_space<vmem>>, vector<2x8x32xf32>
    %c0_2 = arith.constant 0 : index
    %c0_3 = arith.constant 0 : index
    %1 = vector.load %arg2[%c0_2, %c0_3] : memref<2x8xf32, #tpu.memory_space<vmem>>, vector<2x8xf32>
    %cst = arith.constant 0.000000e+00 : f32
    %2 = vector.broadcast %cst : f32 to vector<2x8xf32>
    %3 = arith.cmpf ogt, %1, %2 : vector<2x8xf32>
    %c0_4 = arith.constant 0 : index
    %c0_5 = arith.constant 0 : index
    %4 = vector.load %arg3[%c0_4, %c0_5] : memref<1x32xf32, #tpu.memory_space<vmem>>, vector<1x32xf32>
    %5 = vector.shape_cast %4 : vector<1x32xf32> to vector<1x1x32xf32>
    %6 = vector.broadcast %5 : vector<1x1x32xf32> to vector<2x8x32xf32>
    %7 = arith.mulf %0, %6 : vector<2x8x32xf32>
    %cst_6 = arith.constant dense<0.000000e+00> : vector<2x8xf32>
    %8 = vector.multi_reduction <add>, %7, %cst_6 [2] : vector<2x8x32xf32> to vector<2x8xf32>
    %cst_7 = arith.constant -1.000000e+32 : f32
    %9 = vector.broadcast %cst_7 : f32 to vector<2x8xf32>
    %10 = arith.select %3, %8, %9 : vector<2x8xi1>, vector<2x8xf32>
    %cst_8 = arith.constant dense<0xFF800000> : vector<2xf32>
    %11 = vector.multi_reduction <maximumf>, %10, %cst_8 [1] : vector<2x8xf32> to vector<2xf32>
    %12 = vector.shape_cast %11 : vector<2xf32> to vector<2x1xf32>
    %13 = vector.broadcast %12 : vector<2x1xf32> to vector<2x8xf32>
    %14 = arith.subf %10, %13 : vector<2x8xf32>
    %15 = math.exp %14 : vector<2x8xf32>
    %cst_9 = arith.constant dense<0.000000e+00> : vector<2xf32>
    %16 = vector.multi_reduction <add>, %15, %cst_9 [1] : vector<2x8xf32> to vector<2xf32>
    %17 = vector.shape_cast %16 : vector<2xf32> to vector<2x1xf32>
    %18 = vector.broadcast %17 : vector<2x1xf32> to vector<2x8xf32>
    %19 = arith.divf %15, %18 : vector<2x8xf32>
    %cst_10 = arith.constant 0.000000e+00 : f32
    %20 = vector.broadcast %cst_10 : f32 to vector<2x8xf32>
    %21 = arith.select %3, %19, %20 : vector<2x8xi1>, vector<2x8xf32>
    %22 = vector.shape_cast %21 : vector<2x8xf32> to vector<2x8x1xf32>
    %23 = vector.broadcast %22 : vector<2x8x1xf32> to vector<2x8x32xf32>
    %24 = arith.mulf %0, %23 : vector<2x8x32xf32>
    %cst_11 = arith.constant dense<0.000000e+00> : vector<2x32xf32>
    %25 = vector.multi_reduction <add>, %24, %cst_11 [1] : vector<2x8x32xf32> to vector<2x32xf32>
    %c0_12 = arith.constant 0 : index
    %c0_13 = arith.constant 0 : index
    %26 = vector.load %arg4[%c0_12, %c0_13] : memref<2x32xf32, #tpu.memory_space<vmem>>, vector<2x32xf32>
    tpu.vector_store %arg4[%c0_12, %c0_13], %25 {strides = array<i32>} : memref<2x32xf32, #tpu.memory_space<vmem>>, vector<2x32xf32>,
    %c0_14 = arith.constant 0 : index
    %c0_15 = arith.constant 0 : index
    %27 = vector.load %arg5[%c0_14, %c0_15] : memref<2x8xf32, #tpu.memory_space<vmem>>, vector<2x8xf32>
    tpu.vector_store %arg5[%c0_14, %c0_15], %19 {strides = array<i32>} : memref<2x8xf32, #tpu.memory_space<vmem>>, vector<2x8xf32>,
    return
  }
  func.func @transform_0(%arg0: i32) -> (i32, i32, i32) {
    %c0_i32 = arith.constant 0 : i32
    %c0_i32_0 = arith.constant 0 : i32
    %c0_i32_1 = arith.constant 0 : i32
    return %arg0, %c0_i32, %c0_i32_0 : i32, i32, i32
  }
  func.func @transform_1(%arg0: i32) -> (i32, i32) {
    %c0_i32 = arith.constant 0 : i32
    %c0_i32_0 = arith.constant 0 : i32
    return %arg0, %c0_i32 : i32, i32
  }
  func.func @transform_2(%arg0: i32) -> (i32, i32) {
    %c0_i32 = arith.constant 0 : i32
    %c0_i32_0 = arith.constant 0 : i32
    %c0_i32_1 = arith.constant 0 : i32
    return %c0_i32, %c0_i32_0 : i32, i32
  }
  func.func @transform_3(%arg0: i32) -> (i32, i32) {
    %c0_i32 = arith.constant 0 : i32
    %c0_i32_0 = arith.constant 0 : i32
    return %arg0, %c0_i32 : i32, i32
  }
  func.func @transform_4(%arg0: i32) -> (i32, i32) {
    %c0_i32 = arith.constant 0 : i32
    %c0_i32_0 = arith.constant 0 : i32
    return %arg0, %c0_i32 : i32, i32
  }
}

</mosaic_0001>

<llo_original>
// kernel: tpu_custom_call.1
$region0: #{tpu_custom_call.1}
  #allocation0 [shape = 'u32[]', space=smem, size = 0x4, offset = 0x4, fixed_abs, tag = 'smem constant byte address 0x4 - core index']
  #allocation1 [shape = 'u32[144,128]{1,0:T(1,128)}', space=vmem, size = 0x12000, scoped, tag = 'internal scratch']
  %s0 = inlined_call_operand.hbm [shape: f32[2,8,32], index: 0, kind: input, shape index: {}]
  %s1 = inlined_call_operand.hbm [shape: f32[2,8], index: 1, kind: input, shape index: {}]
  %s2 = inlined_call_operand.vmem [shape: f32[1,32], index: 2, kind: input, shape index: {}]
  %s3 = inlined_call_operand.hbm [shape: f32[2,32], index: 3, kind: output, shape index: {0}]
  %s4 = inlined_call_operand.hbm [shape: f32[2,8], index: 4, kind: output, shape index: {1}]
  %5 = xla_tuple %s3, %s4
  %s6 = sld [smem:[#allocation0]]
  $region38: #{tpu_custom_call.1} parent=0
    _
  %s8 = ssub.s32 1, %s6
  %s9 = scalar_select 0, %s8, %s6
  $region1: #{tpu_custom_call.1} parent=0
    #allocation2 [shape = 'u8[8192]{0}', space=vmem, size = 0x2000, scoped, tag = 'input window, operand 0, single buffered']
    #allocation3 [shape = 's32[1]{0}', space=sflag, size = 0x4, scoped, tag = 'scoped memory for tpu_custom_call.1']
    #allocation4 [shape = 's32[1]{0}', space=sflag, size = 0x4, scoped, tag = 'scoped memory for tpu_custom_call.1']
    #allocation5 [shape = 'u8[1024]{0}', space=vmem, size = 0x400, scoped, tag = 'input window, operand 1, single buffered']
    #allocation6 [shape = 's32[1]{0}', space=sflag, size = 0x4, scoped, tag = 'scoped memory for tpu_custom_call.1']
    #allocation7 [shape = 'u8[1024]{0}', space=vmem, size = 0x400, scoped, tag = 'output window, operand 0, single buffered']
    #allocation8 [shape = 'u8[1024]{0}', space=vmem, size = 0x400, scoped, tag = 'output window, operand 1, single buffered']
    #allocation9 [shape = 's32[1]{0}', space=sflag, size = 0x4, scoped, tag = 'scoped memory for tpu_custom_call.1']
    %10 = vsyncpa [#allocation3], 0
    %11 = vsyncpa [#allocation6], 0
    %12 = vsyncpa [#allocation4], 0
    %13 = vsyncpa [#allocation9], 0
    // Predicated region
    $region2: #{tpu_custom_call.1} parent=1 // pred_check
      _
    $region3: #{tpu_custom_call.1} parent=1 // pred_check_branch
      %15 = sbr.rel (0) target = $region5
    $region4: #{tpu_custom_call.1} parent=1 // pred_region
      %s17 = ssub.s32 256, 256
      %18 = vsyncadd [#allocation3], %s17
      %s19 = sshll.u32 [#allocation2], 4
      %s20 = int_to_ptr.vmem [resolvable:$true] %s19
      %25 = dma.hbm_to_vmem [thread:$0]  %s0, 256, %s20, [#allocation3], 128, 128, 8
    $region5: #{tpu_custom_call.1} parent=1 // pred_fallthru
      _
    // Predicated region
    $region6: #{tpu_custom_call.1} parent=1 // pred_check
      _
    $region7: #{tpu_custom_call.1} parent=1 // pred_check_branch
      %27 = sbr.rel (0) target = $region9
    $region8: #{tpu_custom_call.1} parent=1 // pred_region
      %s29 = ssub.s32 32, 32
      %30 = vsyncadd [#allocation6], %s29
      %s32 = sshll.u32 [#allocation5], 4
      %s33 = int_to_ptr.vmem [resolvable:$true] %s32
      %35 = dma.hbm_to_vmem [thread:$0]  %s1, 32, %s33, [#allocation6]
    $region9: #{tpu_custom_call.1} parent=1 // pred_fallthru
      _
    // Predicated region
    $region10: #{tpu_custom_call.1} parent=1 // pred_check
      _
    $region11: #{tpu_custom_call.1} parent=1 // pred_check_branch
      %37 = sbr.rel (0) target = $region13
    $region12: #{tpu_custom_call.1} parent=1 // pred_region
      _
    $region13: #{tpu_custom_call.1} parent=1 // pred_fallthru
      _
    // Predicated region
    $region14: #{tpu_custom_call.1} parent=1 // pred_check
      _
    $region15: #{tpu_custom_call.1} parent=1 // pred_check_branch
      %39 = sbr.rel (0) target = $region17
    $region16: #{tpu_custom_call.1} parent=1 // pred_region
      %40 = dma.done [#allocation3], 256
    $region17: #{tpu_custom_call.1} parent=1 // pred_fallthru
      _
    // Predicated region
    $region18: #{tpu_custom_call.1} parent=1 // pred_check
      _
    $region19: #{tpu_custom_call.1} parent=1 // pred_check_branch
      %42 = sbr.rel (0) target = $region21
    $region20: #{tpu_custom_call.1} parent=1 // pred_region
      %43 = dma.done [#allocation6], 32
    $region21: #{tpu_custom_call.1} parent=1 // pred_fallthru
      _
    %v44 = vld [vmem:[#allocation2] sm:$0xff]
    %v45 = vld [vmem:[#allocation2 + $0x8] sm:$0xff]
    %v46 = vld [vmem:[#allocation5] sm:$0x3]
    %vm47 = vcmp.gt.f32.partialorder %v46, 0.0
    %v48 = vld [vmem:[%s2] sm:$0x1]
    %v50 = vlaneseq
    %v51 = vshrl.u32 %v50, 7
    %v52 = vsub.s32 0, %v51
    %v53 = vrot.slane %v48, %v52
    %v55 = vmul.f32 %v44, %v53
    %v56 = vmul.f32 %v45, %v53
    %vm57 = vcmask 261120
    %v58 = vsel %vm57, %v55, 0.0
    %59 = vadd.xlane.f32.xlu0 %v58
    %v60 = vpop.xlane.xlu0 %59
    %v61 = vsel %vm57, %v56, 0.0
    %62 = vadd.xlane.f32.xlu0 %v61
    %v63 = vpop.xlane.xlu0 %62
    %v66 = vlaneseq
    %v67 = vand.u32 %v66, 127
    %v68 = vlaneseq
    %v69 = vshrl.u32 %v68, 7
    %v70 = vsub.s32 %v67, %v69
    %v71 = vrot.slane %v60, %v70
    %v72 = vlaneseq
    %v73 = vshrl.u32 %v72, 7
    %v74 = vsub.s32 %v67, %v73
    %v75 = vrot.slane %v63, %v74
    %vm76 = vcmask 1041409
    %v77 = vsel %vm76, %v75, %v71
    %v79 = vsel %vm47, %v77, -1e+32
    %vm80 = vcmask 58368
    %v81 = vsel %vm80, %v79, -inf
    %82 = vmax.xlane.f32.xlu0 %v81
    %v83 = vpop.xlane.xlu0 %82
    %v84 = vsub.f32 %v79, %v83
    %v85 = vmul.f32 %v84, 1.442695
    %v86 = vpow.pop %v85
    %v87 = vsel %vm80, %v86, 0.0
    %88 = vadd.xlane.f32.xlu0 %v87
    %v89 = vpop.xlane.xlu0 %88
    %v90 = vrcp.pop %v89
    %v91 = vmul.f32 %v86, %v90
    %v92 = vsel %vm47, %v91, 0.0
    %v93 = vlaneseq
    %v94 = vshrl.u32 %v93, 7
    %v95 = vsub.s32 0, %v94
    %v96 = vrot.slane %v92, %v95
    %98 = vbcast.lane.b32.xlu0 %v96, 256
    %v99 = vpop.permute.xlu0 %98
    %v100 = vlaneseq
    %v101 = vshrl.u32 %v100, 7
    %v102 = vsub.s32 1, %v101
    %v103 = vrot.slane %v92, %v102
    %105 = vbcast.lane.b32.xlu0 %v103, 256
    %v106 = vpop.permute.xlu0 %105
    %v107 = vmul.f32 %v44, %v99
    %v108 = vmul.f32 %v45, %v106
    %v109 = vsel %vm57, %v107, 0.0
    %v110 = vrot.slane %v109, 4
    %v111 = vadd.f32 %v109, %v110
    %v112 = vrot.slane %v111, 2
    %v113 = vadd.f32 %v111, %v112
    %v114 = vrot.slane %v113, 1
    %v115 = vadd.f32 %v113, %v114
    %v116 = vsel %vm57, %v108, 0.0
    %v117 = vrot.slane %v116, 4
    %v118 = vadd.f32 %v116, %v117
    %v119 = vrot.slane %v118, 2
    %v120 = vadd.f32 %v118, %v119
    %v121 = vrot.slane %v120, 1
    %v122 = vadd.f32 %v120, %v121
    %v125 = vsel %vm76, %v122, %v115
    %vm127 = vcmask 254976
    %128 = vst.msk [vmem:[#allocation7] sm:$0x3] %vm127, %v125
    %129 = vst.msk [vmem:[#allocation8] sm:$0x3] %vm80, %v91
    // Predicated region
    $region22: #{tpu_custom_call.1} parent=1 // pred_check
      _
    $region23: #{tpu_custom_call.1} parent=1 // pred_check_branch
      %131 = sbr.rel (0) target = $region25
    $region24: #{tpu_custom_call.1} parent=1 // pred_region
      %s133 = ssub.s32 32, 32
      %134 = vsyncadd [#allocation4], %s133
      %s136 = sshll.u32 [#allocation7], 4
      %s137 = int_to_ptr.vmem [resolvable:$true] %s136
      %139 = dma.vmem_to_hbm [thread:$0]  %s137, 32, %s3, [#allocation4]
    $region25: #{tpu_custom_call.1} parent=1 // pred_fallthru
      _
    // Predicated region
    $region26: #{tpu_custom_call.1} parent=1 // pred_check
      _
    $region27: #{tpu_custom_call.1} parent=1 // pred_check_branch
      %141 = sbr.rel (0) target = $region29
    $region28: #{tpu_custom_call.1} parent=1 // pred_region
      %s143 = ssub.s32 32, 32
      %144 = vsyncadd [#allocation9], %s143
      %s146 = sshll.u32 [#allocation8], 4
      %s147 = int_to_ptr.vmem [resolvable:$true] %s146
      %149 = dma.vmem_to_hbm [thread:$0]  %s147, 32, %s4, [#allocation9]
    $region29: #{tpu_custom_call.1} parent=1 // pred_fallthru
      _
    // Predicated region
    $region30: #{tpu_custom_call.1} parent=1 // pred_check
      _
    $region31: #{tpu_custom_call.1} parent=1 // pred_check_branch
      %151 = sbr.rel (0) target = $region33
    $region32: #{tpu_custom_call.1} parent=1 // pred_region
      %152 = dma.done [#allocation4], 32
    $region33: #{tpu_custom_call.1} parent=1 // pred_fallthru
      _
    // Predicated region
    $region34: #{tpu_custom_call.1} parent=1 // pred_check
      _
    $region35: #{tpu_custom_call.1} parent=1 // pred_check_branch
      %154 = sbr.rel (0) target = $region37
    $region36: #{tpu_custom_call.1} parent=1 // pred_region
      %155 = dma.done [#allocation9], 32
    $region37: #{tpu_custom_call.1} parent=1 // pred_fallthru
      _
    %156 = vsyncpa [#allocation3], 1
    %157 = vsyncpa [#allocation6], 1
    %158 = vsyncpa [#allocation4], 1
    %159 = vsyncpa [#allocation9], 1

</llo_original>
